<compile_context>
chip_gen: v6e
topology: v6e:2x2x1
jax: 0.10.0
libtpu: 0.0.40
codegen_flags: <defaults>
</compile_context>

<pallas_src>
import jax
import jax.numpy as jnp
from jax.experimental import pallas as pl
from jax.experimental.pallas import tpu as pltpu


# ---------------------------------------------------------------------------
# Kernel bodies
# ---------------------------------------------------------------------------
def _mm_kernel_single(a_ref, b_ref, o_ref):
    # Full contraction in one shot (tk == L): no k grid axis, no accumulator
    # read-modify-write; B's block index is constant along i so it is not
    # re-DMA'd between consecutive row tiles.
    o_ref[...] = jnp.dot(
        a_ref[...], b_ref[...], preferred_element_type=jnp.float32
    ).astype(o_ref.dtype)


def _mm_kernel_f32out(a_ref, b_ref, o_ref):
    # f32 output: accumulate directly into the resident output tile.
    # NOTE: correctness relies on the reduction axis being the LAST grid axis
    # and the output index_map being k-independent (resident accumulator).
    prod = jnp.dot(a_ref[...], b_ref[...], preferred_element_type=jnp.float32)
    k = pl.program_id(2)

    @pl.when(k == 0)
    def _():
        o_ref[...] = prod          # direct store: no zero-init + add on step 0

    @pl.when(k > 0)
    def _():
        o_ref[...] += prod


def _mm_kernel_acc(a_ref, b_ref, o_ref, acc_ref):
    # Generic output dtype: f32 scratch accumulator, cast once on the last step.
    prod = jnp.dot(a_ref[...], b_ref[...], preferred_element_type=jnp.float32)
    k = pl.program_id(2)

    @pl.when(k == 0)
    def _():
        acc_ref[...] = prod

    @pl.when(k > 0)
    def _():
        acc_ref[...] += prod

    @pl.when(k == pl.num_programs(2) - 1)
    def _():
        o_ref[...] = acc_ref[...].astype(o_ref.dtype)


# ---------------------------------------------------------------------------
# Tile / budget selection
# ---------------------------------------------------------------------------
def _vmem_budget_bytes():
    cap = None
    try:
        cap = getattr(pltpu.get_tpu_info(), "vmem_capacity_bytes", None)
    except Exception:
        cap = None
    if not cap:
        cap = 64 * 1024 * 1024      # conservative default (v7x per-core VMEM)
    # ~25% headroom for compiler-internal scratch; never above ~100 MiB.
    return int(min((cap * 3) // 4, 100 * 1024 * 1024))


def _largest_divisor(dim, candidates):
    for c in candidates:
        if dim % c == 0:
            return c
    return None


_TM_CANDIDATES = (4096, 2048, 1024, 512, 256, 128, 64, 32, 16, 8)


def _tiled_matmul(a2, b2, out_dtype):
    """a2: (M, L) @ b2: (L, K) -> (M, K); returns None if Pallas is a bad fit."""
    M, L = a2.shape
    L2, K = b2.shape
    assert L == L2

    # Tiny / awkward problems: pallas_call overhead dominates -> let XLA fuse.
    if M < 64 or K < 128 or L < 128:
        return None

    ia = jnp.dtype(a2.dtype).itemsize
    ib = jnp.dtype(b2.dtype).itemsize
    io = jnp.dtype(out_dtype).itemsize
    f32_out = jnp.dtype(out_dtype) == jnp.dtype(jnp.float32)
    budget = _vmem_budget_bytes()

    # Contraction tile: take tk == L when it fits -> no reduction grid axis.
    if L <= 2048:
        tk = L
    else:
        tk = _largest_divisor(L, (2048, 1024, 512, 256, 128))
        if tk is None:
            return None
    single_pass = tk == L

    # Output-lane tile: full K when small enough (lane-dense output, B once).
    if K <= 1024:
        tn = K
    else:
        tn = _largest_divisor(K, (1024, 512, 256, 128))
        if tn is None:
            return None

    # Row tile: largest candidate whose double-buffered working set fits VMEM.
    def working_set(tm):
        ws = 2 * (tm * tk * ia + tk * tn * ib)           # double-buffered inputs
        if single_pass:
            ws += 2 * tm * tn * io                        # double-buffered output
        else:
            ws += tm * tn * io                            # resident output tile
            if not f32_out:
                ws += tm * tn * 4                         # f32 scratch accumulator
        return ws

    m_cap = max(((M + 7) // 8) * 8, 8)
    tm = None
    for cand in _TM_CANDIDATES:
        if cand > m_cap:
            continue
        if working_set(cand) <= budget:
            tm = cand
            break
    if tm is None:
        return None

    # v7x has two TensorCores: guarantee >= 2 parallel grid blocks.
    if (-(-M // tm)) * (K // tn) < 2 and tm >= 16:
        tm //= 2

    # Pad M (= b*i*j) up to a tile multiple; the zero rows are sliced off after.
    Mp = (-(-M // tm)) * tm
    if Mp != M:
        a2 = jnp.pad(a2, ((0, Mp - M), (0, 0)))

    n_i, n_j = Mp // tm, K // tn
    cost = pl.CostEstimate(
        flops=2 * Mp * K * L,
        transcendentals=0,
        bytes_accessed=(
            ia * Mp * L * n_j        # A re-streamed once per output-column tile
            + ib * L * K * n_i       # B re-streamed once per output-row tile
            + io * Mp * K
        ),
    )

    if single_pass:
        grid = (n_i, n_j)
        in_specs = [
            pl.BlockSpec((tm, L), lambda i, j: (i, 0)),
            pl.BlockSpec((L, tn), lambda i, j: (0, j)),
        ]
        out_specs = pl.BlockSpec((tm, tn), lambda i, j: (i, j))
        scratch = []
        kernel = _mm_kernel_single
        dims = ("parallel", "parallel")
    else:
        grid = (n_i, n_j, L // tk)   # reduction axis LAST (resident accumulator)
        in_specs = [
            pl.BlockSpec((tm, tk), lambda i, j, k: (i, k)),
            pl.BlockSpec((tk, tn), lambda i, j, k: (k, j)),
        ]
        out_specs = pl.BlockSpec((tm, tn), lambda i, j, k: (i, j))
        if f32_out:
            scratch = []
            kernel = _mm_kernel_f32out
        else:
            scratch = [pltpu.VMEM((tm, tn), jnp.float32)]
            kernel = _mm_kernel_acc
        dims = ("parallel", "parallel", "arbitrary")

    out = pl.pallas_call(
        kernel,
        out_shape=jax.ShapeDtypeStruct((Mp, K), out_dtype),
        grid_spec=pltpu.PrefetchScalarGridSpec(
            num_scalar_prefetch=0,
            grid=grid,
            in_specs=in_specs,
            out_specs=out_specs,
            scratch_shapes=scratch,
        ),
        compiler_params=pltpu.CompilerParams(
            dimension_semantics=dims,
            vmem_limit_bytes=budget,
        ),
        cost_estimate=cost,
    )(a2, b2)

    return out[:M] if Mp != M else out


# ---------------------------------------------------------------------------
# Module forward: C[b, i, j, k] = sum_l A[b, i, j, l] * B[l, k]
# ---------------------------------------------------------------------------
def model_forward(A, B):
    b_, i_, j_, l_ = A.shape
    l2, k_ = B.shape
    assert l_ == l2
    M = b_ * i_ * j_
    A2 = A.reshape(M, l_)
    out_dtype = jnp.promote_types(A.dtype, B.dtype)   # match torch promotion

    C2 = _tiled_matmul(A2, B, out_dtype)
    if C2 is None:  # shapes that are not worth / able to tile -> XLA einsum
        C2 = jnp.einsum("ml,lk->mk", A2, B).astype(out_dtype)
    return C2.reshape(b_, i_, j_, k_)


if __name__ == "__main__":
    # Small shapes consistent with the (b, i, j, l) x (l, k) contract, chosen so
    # the Pallas path (not the tiny-shape fallback) is exercised:
    # M = b*i*j = 128, L = 256, K = 256 -> tk=L, tn=K, tm=64, grid=(2, 1).
    b_, i_, j_, l_, k_ = 2, 4, 16, 256, 256
    key = jax.random.PRNGKey(0)
    ka, kb = jax.random.split(key)
    A = jax.random.normal(ka, (b_, i_, j_, l_), dtype=jnp.float32)
    B = jax.random.normal(kb, (l_, k_), dtype=jnp.float32)

    C = model_forward(A, B)
    C = jax.block_until_ready(C)

    # Reference check against plain JAX einsum.
    C_ref = jnp.einsum("bijl,lk->bijk", A, B)
    assert C.shape == (b_, i_, j_, k_)
    assert jnp.allclose(C, C_ref, atol=2e-2, rtol=2e-2)

    print("KERNEL_OK")
</pallas_src>

<mosaic_0001>
module attributes {stable_mosaic.version = 11 : i64} {
  func.func @_mm_kernel_single(%arg0: i32, %arg1: i32, %arg2: memref<64x256xf32, #tpu.memory_space<vmem>>, %arg3: memref<256x256xf32, #tpu.memory_space<vmem>>, %arg4: memref<64x256xf32, #tpu.memory_space<vmem>>) attributes {dimension_semantics = [#tpu.dimension_semantics<parallel>, #tpu.dimension_semantics<parallel>], iteration_bounds = array<i64: 2, 1>, scalar_prefetch = 0 : i64, scratch_operands = 0 : i64, tpu.core_type = #tpu.core_type<tc>, window_params = [{transform_indices = @transform_0, window_bounds = array<i64: 64, 256>}, {transform_indices = @transform_1, window_bounds = array<i64: 256, 256>}, {transform_indices = @transform_2, window_bounds = array<i64: 64, 256>}]} {
    %c0 = arith.constant 0 : index
    %c0_0 = arith.constant 0 : index
    %0 = vector.load %arg2[%c0, %c0_0] : memref<64x256xf32, #tpu.memory_space<vmem>>, vector<64x256xf32>
    %c0_1 = arith.constant 0 : index
    %c0_2 = arith.constant 0 : index
    %1 = vector.load %arg3[%c0_1, %c0_2] : memref<256x256xf32, #tpu.memory_space<vmem>>, vector<256x256xf32>
    %cst = arith.constant dense<0.000000e+00> : vector<64x256xf32>
    %2 = tpu.matmul %0, %1, %cst {dimension_numbers = #tpu.dot_dimension_numbers<[1], [0], [0], [1], [0, 0, 1, 1], [], []>} : vector<64x256xf32>, vector<256x256xf32>, vector<64x256xf32> -> vector<64x256xf32>
    %c0_3 = arith.constant 0 : index
    %c0_4 = arith.constant 0 : index
    %3 = vector.load %arg4[%c0_3, %c0_4] : memref<64x256xf32, #tpu.memory_space<vmem>>, vector<64x256xf32>
    tpu.vector_store %arg4[%c0_3, %c0_4], %2 {strides = array<i32>} : memref<64x256xf32, #tpu.memory_space<vmem>>, vector<64x256xf32>,
    return
  }
  func.func @transform_0(%arg0: i32, %arg1: i32) -> (i32, i32) {
    %c0_i32 = arith.constant 0 : i32
    %c0_i32_0 = arith.constant 0 : i32
    return %arg0, %c0_i32 : i32, i32
  }
  func.func @transform_1(%arg0: i32, %arg1: i32) -> (i32, i32) {
    %c0_i32 = arith.constant 0 : i32
    %c0_i32_0 = arith.constant 0 : i32
    return %c0_i32, %arg1 : i32, i32
  }
  func.func @transform_2(%arg0: i32, %arg1: i32) -> (i32, i32) {
    %c0_i32 = arith.constant 0 : i32
    return %arg0, %arg1 : i32, i32
  }
}

</mosaic_0001>

<llo_original>
// kernel: tpu_custom_call.1
$region0: #{tpu_custom_call.1}
  #allocation0 [shape = 'u32[]', space=smem, size = 0x4, offset = 0x4, fixed_abs, tag = 'smem constant byte address 0x4 - core index']
  #allocation1 [shape = 'u32[144,128]{1,0:T(1,128)}', space=vmem, size = 0x12000, scoped, tag = 'internal scratch']
  %s0 = inlined_call_operand.hbm [shape: f32[128,256], index: 0, kind: input, shape index: {}]
  %s1 = inlined_call_operand.hbm [shape: f32[256,256], index: 1, kind: input, shape index: {}]
  %s2 = inlined_call_operand.hbm [shape: f32[128,256], index: 2, kind: output, shape index: {}]
  %s3 = sld [smem:[#allocation0]]
  $region49: #{tpu_custom_call.1} parent=0
    _
  %s5 = ssub.s32 1, %s3
  %s6 = scalar_select 0, %s5, %s3
  $region1: #{tpu_custom_call.1} parent=0
    #allocation2 [shape = 'u8[131072]{0}', space=vmem, size = 0x20000, scoped, tag = 'input window, operand 0']
    #allocation3 [shape = 's32[2]{0}', space=sflag, size = 0x8, scoped, tag = 'scoped memory for tpu_custom_call.1']
    #allocation4 [shape = 's32[2]{0}', space=sflag, size = 0x8, scoped, tag = 'scoped memory for tpu_custom_call.1']
    #allocation5 [shape = 'u8[262144]{0}', space=vmem, size = 0x40000, scoped, tag = 'input window, operand 1, single buffered']
    #allocation6 [shape = 's32[1]{0}', space=sflag, size = 0x4, scoped, tag = 'scoped memory for tpu_custom_call.1']
    #allocation7 [shape = 'u8[131072]{0}', space=vmem, size = 0x20000, scoped, tag = 'output window, operand 0']
    %7 = vsyncpa [#allocation3], 0
    %s8 = scalar_lea.sflag [#allocation3], 1
    %9 = vsyncpa %s8, 0
    %10 = vsyncpa [#allocation6], 0
    %11 = vsyncpa [#allocation4], 0
    %s12 = scalar_lea.sflag [#allocation4], 1
    %13 = vsyncpa %s12, 0
    loop: start=0, step=1, limit=4
    $region2: #{tpu_custom_call.1} parent=1 // loop_pre_header
      _
    $region3: #{tpu_custom_call.1} parent=1 // loop_header
      %s15 = sphi 0, %s19
      %p16 = scmp.ge.s32.totalorder %s15, 4
      %s22 = sphi 0, %s34
      %s23 = sphi 0, %s30
      %s24 = sphi 0, %s22
      %s25 = sphi 0, %s23
      %s26 = sphi 0, %s24
      %s27 = sphi 0, %s25
      %s37 = sphi 0, %s39
      %s40 = sphi 0, %s37
      %s41 = sphi 0, %s40
      %s57 = sphi 0, %s41
      %s63 = sphi 0, %s65
      %s66 = sphi 0, %s63
      %s67 = sphi 0, %s66
      %s83 = sphi 0, %s67
      %s91 = sphi 0, %s93
      %s94 = sphi 0, %s91
      %s95 = sphi 0, %s94
      %s111 = sphi 0, %s95
    $region4: #{tpu_custom_call.1} parent=1 // loop_header_branch
      %18 = sbr.rel (%p16) target = $region8
    $region5: #{tpu_custom_call.1} parent=1 // loop_body
      %s20 = ssub.s32 %s15, 1
      %s21 = ssub.s32 %s15, 2
      %s28 = sadd.s32 1, %s23
      %p29 = scmp.ge.s32.totalorder %s28, 1
      %s30 = scalar_select %p29, 0, %s28
      %s31 = sadd.s32 1, %s22
      %s32 = scalar_select %p29, %s31, %s22
      %p33 = scmp.ge.s32.totalorder %s32, 2
      %s34 = scalar_select %p33, 0, %s32
      %s35 = ssub.s32 %s22, %s34
      %p36 = scmp.eq.s32.totalorder %s35, 0
      %s38 = sadd.s32 %s37, 1
      %s39 = scalar_select %p36, %s37, %s38
      %p42 = pneg %p36
      %p43 = scmp.eq.s32.totalorder %s15, 1
      %p44 = por %p42, %p43
      %p45 = scmp.ne.s32.totalorder %s37, %s40
      %p46 = scmp.eq.s32.totalorder %s15, 0
      %p47 = por %p45, %p46
      %p48 = scmp.ne.s32.totalorder %s37, %s40
      %p49 = scmp.eq.s32.totalorder %s20, 1
      %p50 = por %p48, %p49
      %p51 = scmp.ne.s32.totalorder %s40, %s41
      %p52 = scmp.eq.s32.totalorder %s20, 0
      %p53 = por %p51, %p52
      %p54 = scmp.ne.s32.totalorder %s40, %s41
      %p55 = scmp.eq.s32.totalorder %s21, 1
      %p56 = por %p54, %p55
      %p58 = scmp.ne.s32.totalorder %s41, %s57
      %p59 = scmp.eq.s32.totalorder %s21, 0
      %p60 = por %p58, %p59
      %s61 = ssub.s32 %s23, %s30
      %p62 = scmp.eq.s32.totalorder %s61, 0
      %s64 = sadd.s32 %s63, 1
      %s65 = scalar_select %p62, %s63, %s64
      %p68 = pneg %p62
      %p69 = scmp.eq.s32.totalorder %s15, 1
      %p70 = por %p68, %p69
      %p71 = scmp.ne.s32.totalorder %s63, %s66
      %p72 = scmp.eq.s32.totalorder %s15, 0
      %p73 = por %p71, %p72
      %p74 = scmp.ne.s32.totalorder %s63, %s66
      %p75 = scmp.eq.s32.totalorder %s20, 1
      %p76 = por %p74, %p75
      %p77 = scmp.ne.s32.totalorder %s66, %s67
      %p78 = scmp.eq.s32.totalorder %s20, 0
      %p79 = por %p77, %p78
      %p80 = scmp.ne.s32.totalorder %s66, %s67
      %p81 = scmp.eq.s32.totalorder %s21, 1
      %p82 = por %p80, %p81
      %p84 = scmp.ne.s32.totalorder %s67, %s83
      %p85 = scmp.eq.s32.totalorder %s21, 0
      %p86 = por %p84, %p85
      %s87 = ssub.s32 %s22, %s34
      %s88 = ssub.s32 %s23, %s30
      %s89 = sor.u32 %s87, %s88
      %p90 = scmp.eq.s32.totalorder %s89, 0
      %s92 = sadd.s32 %s91, 1
      %s93 = scalar_select %p90, %s91, %s92
      %p96 = pneg %p90
      %p97 = scmp.eq.s32.totalorder %s15, 1
      %p98 = por %p96, %p97
      %p99 = scmp.ne.s32.totalorder %s91, %s94
      %p100 = scmp.eq.s32.totalorder %s15, 0
      %p101 = por %p99, %p100
      %p102 = scmp.ne.s32.totalorder %s91, %s94
      %p103 = scmp.eq.s32.totalorder %s20, 1
      %p104 = por %p102, %p103
      %p105 = scmp.ne.s32.totalorder %s94, %s95
      %p106 = scmp.eq.s32.totalorder %s20, 0
      %p107 = por %p105, %p106
      %p108 = scmp.ne.s32.totalorder %s94, %s95
      %p109 = scmp.eq.s32.totalorder %s21, 1
      %p110 = por %p108, %p109
      %p112 = scmp.ne.s32.totalorder %s95, %s111
      %p113 = scmp.eq.s32.totalorder %s21, 0
      %p114 = por %p112, %p113
      %p115 = scmp.le.s32.totalorder 1, %s15
      %p116 = scmp.lt.s32.totalorder %s15, 3
      %p117 = pnand %p115, %p116
      %p118 = pneg %p117
      // Predicated region
      $region9: #{tpu_custom_call.1} parent=5 // pred_check
        _
      $region10: #{tpu_custom_call.1} parent=5 // pred_check_branch
        %120 = sbr.rel (%p117) target = $region12
      $region11: #{tpu_custom_call.1} parent=5 // pred_region
        %s121 = ssub.s32 %s15, 1
        // Predicated region
        $region13: #{tpu_custom_call.1} parent=11 // pred_check
          %p122 = pneg %p79
        $region14: #{tpu_custom_call.1} parent=11 // pred_check_branch
          %124 = sbr.rel (%p122) target = $region16
        $region15: #{tpu_custom_call.1} parent=11 // pred_region
          %s125 = smul.u32 2, %s25
          %s127 = ssub.s32 8192, 8192
          %128 = vsyncadd [#allocation6], %s127
          %s129 = smul.addr %s125, 128
          %s130 = scalar_lea.hbm %s1, %s129
          %s131 = sshll.u32 [#allocation5], 4
          %s132 = int_to_ptr.vmem [resolvable:$true] %s131
          %137 = dma.hbm_to_vmem [thread:$0]  %s130, 8192, %s132, [#allocation6], 256, 256, 16
        $region16: #{tpu_custom_call.1} parent=11 // pred_fallthru
          _
      $region12: #{tpu_custom_call.1} parent=5 // pred_fallthru
        _
      %p138 = scmp.lt.s32.totalorder %s15, 2
      // Predicated region
      $region17: #{tpu_custom_call.1} parent=5 // pred_check
        %p139 = pneg %p138
      $region18: #{tpu_custom_call.1} parent=5 // pred_check_branch
        %141 = sbr.rel (%p139) target = $region20
      $region19: #{tpu_custom_call.1} parent=5 // pred_region
        // Predicated region
        $region21: #{tpu_custom_call.1} parent=19 // pred_check
          %p142 = pneg %p47
        $region22: #{tpu_custom_call.1} parent=19 // pred_check_branch
          %144 = sbr.rel (%p142) target = $region24
        $region23: #{tpu_custom_call.1} parent=19 // pred_region
          %s145 = sand.u32 %s37, 1
          %s146 = scalar_lea.sflag [#allocation3], %s145
          %s147 = sand.u32 %s37, 1
          %s148 = smul.addr %s147, 128
          %s149 = scalar_lea.vmem [#allocation2], %s148
          %s150 = smul.u32 8, %s22
          %s152 = ssub.s32 2048, 2048
          %153 = vsyncadd %s146, %s152
          %s154 = smul.addr %s150, 2
          %s155 = smul.addr %s154, 128
          %s156 = scalar_lea.hbm %s0, %s155
          %s157 = sshll.u32 %s149, 4
          %s158 = int_to_ptr.vmem [resolvable:$true] %s157
          %163 = dma.hbm_to_vmem [thread:$0]  %s156, 2048, %s158, %s146, 256, 256, 16
        $region24: #{tpu_custom_call.1} parent=19 // pred_fallthru
          _
      $region20: #{tpu_custom_call.1} parent=5 // pred_fallthru
        _
      %p164 = scmp.le.s32.totalorder 1, %s15
      %p165 = scmp.lt.s32.totalorder %s15, 3
      %p166 = pnand %p164, %p165
      %p167 = pneg %p166
      // Predicated region
      $region25: #{tpu_custom_call.1} parent=5 // pred_check
        _
      $region26: #{tpu_custom_call.1} parent=5 // pred_check_branch
        %169 = sbr.rel (%p166) target = $region28
      $region27: #{tpu_custom_call.1} parent=5 // pred_region
        %s170 = ssub.s32 %s15, 1
        %s171 = sand.u32 %s40, 1
        %s172 = scalar_lea.sflag [#allocation3], %s171
        %s173 = sand.u32 %s40, 1
        %s174 = smul.addr %s173, 128
        %s175 = scalar_lea.vmem [#allocation2], %s174
        // Predicated region
        $region29: #{tpu_custom_call.1} parent=27 // pred_check
          %p176 = pneg %p53
        $region30: #{tpu_custom_call.1} parent=27 // pred_check_branch
          %178 = sbr.rel (%p176) target = $region32
        $region31: #{tpu_custom_call.1} parent=27 // pred_region
          %179 = dma.done %s172, 2048
        $region32: #{tpu_custom_call.1} parent=27 // pred_fallthru
          _
        // Predicated region
        $region33: #{tpu_custom_call.1} parent=27 // pred_check
          %p180 = pneg %p79
        $region34: #{tpu_custom_call.1} parent=27 // pred_check_branch
          %182 = sbr.rel (%p180) target = $region36
        $region35: #{tpu_custom_call.1} parent=27 // pred_region
          %183 = dma.done [#allocation6], 8192
        $region36: #{tpu_custom_call.1} parent=27 // pred_fallthru
          _
        %s184 = sand.u32 %s40, 1
        %s185 = scalar_lea.sflag [#allocation3], %s184
        %s186 = sand.u32 %s40, 1
        %s187 = smul.addr %s186, 128
        %s188 = scalar_lea.vmem [#allocation2], %s187
        %p189 = pneg %p53
        %p190 = pneg %p50
        %p191 = pneg %p79
        %p192 = pneg %p76
        %p193 = pneg %p107
        %p194 = pneg %p104
        %s195 = sand.u32 %s94, 1
        %s196 = scalar_lea.sflag [#allocation4], %s195
        %s197 = sand.u32 %s94, 1
        %s198 = smul.addr %s197, 128
        %s199 = scalar_lea.vmem [#allocation7], %s198
        %s200 = smul.u32 8, %s24
        %s201 = smul.u32 2, %s25
        %s202 = smul.u32 8, %s24
        %s203 = smul.u32 2, %s25
        %v204 = vld [vmem:[%s175] sm:$0xff]
        %v205 = vld [vmem:[%s175 + $0x8] sm:$0xff]
        %v206 = vld [vmem:[%s175 + $0x10] sm:$0xff]
        %v207 = vld [vmem:[%s175 + $0x18] sm:$0xff]
        %v208 = vld [vmem:[%s175 + $0x20] sm:$0xff]
        %v209 = vld [vmem:[%s175 + $0x28] sm:$0xff]
        %v210 = vld [vmem:[%s175 + $0x30] sm:$0xff]
        %v211 = vld [vmem:[%s175 + $0x38] sm:$0xff]
        %v212 = vld [vmem:[%s175 + $0x40] sm:$0xff]
        %v213 = vld [vmem:[%s175 + $0x48] sm:$0xff]
        %v214 = vld [vmem:[%s175 + $0x50] sm:$0xff]
        %v215 = vld [vmem:[%s175 + $0x58] sm:$0xff]
        %v216 = vld [vmem:[%s175 + $0x60] sm:$0xff]
        %v217 = vld [vmem:[%s175 + $0x68] sm:$0xff]
        %v218 = vld [vmem:[%s175 + $0x70] sm:$0xff]
        %v219 = vld [vmem:[%s175 + $0x78] sm:$0xff]
        %v220 = vld [vmem:[#allocation5] sm:$0xff]
        %v221 = vld [vmem:[#allocation5 + $0x8] sm:$0xff]
        %v222 = vld [vmem:[#allocation5 + $0x10] sm:$0xff]
        %v223 = vld [vmem:[#allocation5 + $0x18] sm:$0xff]
        %v224 = vld [vmem:[#allocation5 + $0x20] sm:$0xff]
        %v225 = vld [vmem:[#allocation5 + $0x28] sm:$0xff]
        %v226 = vld [vmem:[#allocation5 + $0x30] sm:$0xff]
        %v227 = vld [vmem:[#allocation5 + $0x38] sm:$0xff]
        %v228 = vld [vmem:[#allocation5 + $0x40] sm:$0xff]
        %v229 = vld [vmem:[#allocation5 + $0x48] sm:$0xff]
        %v230 = vld [vmem:[#allocation5 + $0x50] sm:$0xff]
        %v231 = vld [vmem:[#allocation5 + $0x58] sm:$0xff]
        %v232 = vld [vmem:[#allocation5 + $0x60] sm:$0xff]
        %v233 = vld [vmem:[#allocation5 + $0x68] sm:$0xff]
        %v234 = vld [vmem:[#allocation5 + $0x70] sm:$0xff]
        %v235 = vld [vmem:[#allocation5 + $0x78] sm:$0xff]
        %v236 = vld [vmem:[#allocation5 + $0x80] sm:$0xff]
        %v237 = vld [vmem:[#allocation5 + $0x88] sm:$0xff]
        %v238 = vld [vmem:[#allocation5 + $0x90] sm:$0xff]
        %v239 = vld [vmem:[#allocation5 + $0x98] sm:$0xff]
        %v240 = vld [vmem:[#allocation5 + $0xa0] sm:$0xff]
        %v241 = vld [vmem:[#allocation5 + $0xa8] sm:$0xff]
        %v242 = vld [vmem:[#allocation5 + $0xb0] sm:$0xff]
        %v243 = vld [vmem:[#allocation5 + $0xb8] sm:$0xff]
        %v244 = vld [vmem:[#allocation5 + $0xc0] sm:$0xff]
        %v245 = vld [vmem:[#allocation5 + $0xc8] sm:$0xff]
        %v246 = vld [vmem:[#allocation5 + $0xd0] sm:$0xff]
        %v247 = vld [vmem:[#allocation5 + $0xd8] sm:$0xff]
        %v248 = vld [vmem:[#allocation5 + $0xe0] sm:$0xff]
        %v249 = vld [vmem:[#allocation5 + $0xe8] sm:$0xff]
        %v250 = vld [vmem:[#allocation5 + $0xf0] sm:$0xff]
        %v251 = vld [vmem:[#allocation5 + $0xf8] sm:$0xff]
        %v252 = vld [vmem:[#allocation5 + $0x100] sm:$0xff]
        %v253 = vld [vmem:[#allocation5 + $0x108] sm:$0xff]
        %v254 = vld [vmem:[#allocation5 + $0x110] sm:$0xff]
        %v255 = vld [vmem:[#allocation5 + $0x118] sm:$0xff]
        %v256 = vld [vmem:[#allocation5 + $0x120] sm:$0xff]
        %v257 = vld [vmem:[#allocation5 + $0x128] sm:$0xff]
        %v258 = vld [vmem:[#allocation5 + $0x130] sm:$0xff]
        %v259 = vld [vmem:[#allocation5 + $0x138] sm:$0xff]
        %v260 = vld [vmem:[#allocation5 + $0x140] sm:$0xff]
        %v261 = vld [vmem:[#allocation5 + $0x148] sm:$0xff]
        %v262 = vld [vmem:[#allocation5 + $0x150] sm:$0xff]
        %v263 = vld [vmem:[#allocation5 + $0x158] sm:$0xff]
        %v264 = vld [vmem:[#allocation5 + $0x160] sm:$0xff]
        %v265 = vld [vmem:[#allocation5 + $0x168] sm:$0xff]
        %v266 = vld [vmem:[#allocation5 + $0x170] sm:$0xff]
        %v267 = vld [vmem:[#allocation5 + $0x178] sm:$0xff]
        %v268 = vld [vmem:[#allocation5 + $0x180] sm:$0xff]
        %v269 = vld [vmem:[#allocation5 + $0x188] sm:$0xff]
        %v270 = vld [vmem:[#allocation5 + $0x190] sm:$0xff]
        %v271 = vld [vmem:[#allocation5 + $0x198] sm:$0xff]
        %v272 = vld [vmem:[#allocation5 + $0x1a0] sm:$0xff]
        %v273 = vld [vmem:[#allocation5 + $0x1a8] sm:$0xff]
        %v274 = vld [vmem:[#allocation5 + $0x1b0] sm:$0xff]
        %v275 = vld [vmem:[#allocation5 + $0x1b8] sm:$0xff]
        %v276 = vld [vmem:[#allocation5 + $0x1c0] sm:$0xff]
        %v277 = vld [vmem:[#allocation5 + $0x1c8] sm:$0xff]
        %v278 = vld [vmem:[#allocation5 + $0x1d0] sm:$0xff]
        %v279 = vld [vmem:[#allocation5 + $0x1d8] sm:$0xff]
        %v280 = vld [vmem:[#allocation5 + $0x1e0] sm:$0xff]
        %v281 = vld [vmem:[#allocation5 + $0x1e8] sm:$0xff]
        %v282 = vld [vmem:[#allocation5 + $0x1f0] sm:$0xff]
        %v283 = vld [vmem:[#allocation5 + $0x1f8] sm:$0xff]
        %284 = vmatprep.subr.mxu0 %v251
        %285 = vmatpush1.msra.mxu0 %v250
        %286 = vmatprep.subr.mxu0 %v249
        %287 = vmatpush1.msra.mxu0 %v248
        %288 = vmatprep.subr.mxu0 %v247
        %289 = vmatpush1.msra.mxu0 %v246
        %290 = vmatprep.subr.mxu0 %v245
        %291 = vmatpush1.msra.mxu0 %v244
        %292 = vmatprep.subr.mxu0 %v243
        %293 = vmatpush1.msra.mxu0 %v242
        %294 = vmatprep.subr.mxu0 %v241
        %295 = vmatpush1.msra.mxu0 %v240
        %296 = vmatprep.subr.mxu0 %v239
        %297 = vmatpush1.msra.mxu0 %v238
        %298 = vmatprep.subr.mxu0 %v237
        %299 = vmatpush1.msra.mxu0 %v236
        %300 = vmatprep.subr.mxu0 %v235
        %301 = vmatpush1.msra.mxu0 %v234
        %302 = vmatprep.subr.mxu0 %v233
        %303 = vmatpush1.msra.mxu0 %v232
        %304 = vmatprep.subr.mxu0 %v231
        %305 = vmatpush1.msra.mxu0 %v230
        %306 = vmatprep.subr.mxu0 %v229
        %307 = vmatpush1.msra.mxu0 %v228
        %308 = vmatprep.subr.mxu0 %v227
        %309 = vmatpush1.msra.mxu0 %v226
        %310 = vmatprep.subr.mxu0 %v225
        %311 = vmatpush1.msra.mxu0 %v224
        %312 = vmatprep.subr.mxu0 %v223
        %313 = vmatpush1.msra.mxu0 %v222
        %314 = vmatprep.subr.mxu0 %v221
        %315 = vmatpush1.msra.mxu0 %v220
        %316 = vmatprep.subr.mxu0 %v283
        %317 = vmatpush2.msra.mxu0 %v282
        %318 = vmatprep.subr.mxu0 %v281
        %319 = vmatpush2.msra.mxu0 %v280
        %320 = vmatprep.subr.mxu0 %v279
        %321 = vmatpush2.msra.mxu0 %v278
        %322 = vmatprep.subr.mxu0 %v277
        %323 = vmatpush2.msra.mxu0 %v276
        %324 = vmatprep.subr.mxu0 %v275
        %325 = vmatpush2.msra.mxu0 %v274
        %326 = vmatprep.subr.mxu0 %v273
        %327 = vmatpush2.msra.mxu0 %v272
        %328 = vmatprep.subr.mxu0 %v271
        %329 = vmatpush2.msra.mxu0 %v270
        %330 = vmatprep.subr.mxu0 %v269
        %331 = vmatpush2.msra.mxu0 %v268
        %332 = vmatprep.subr.mxu0 %v267
        %333 = vmatpush2.msra.mxu0 %v266
        %334 = vmatprep.subr.mxu0 %v265
        %335 = vmatpush2.msra.mxu0 %v264
        %336 = vmatprep.subr.mxu0 %v263
        %337 = vmatpush2.msra.mxu0 %v262
        %338 = vmatprep.subr.mxu0 %v261
        %339 = vmatpush2.msra.mxu0 %v260
        %340 = vmatprep.subr.mxu0 %v259
        %341 = vmatpush2.msra.mxu0 %v258
        %342 = vmatprep.subr.mxu0 %v257
        %343 = vmatpush2.msra.mxu0 %v256
        %344 = vmatprep.subr.mxu0 %v255
        %345 = vmatpush2.msra.mxu0 %v254
        %346 = vmatprep.subr.mxu0 %v253
        %347 = vmatpush2.msra.mxu0 %v252
        %348 = vmatprep.mubr.f32.mxu0 %v205
        %349 = vmatmul.mubr.f32.gmra.mxu0 %v204
        %v350 = vpop.f32.mrf.mxu0
        %v351 = vadd.f32 0.0, %v350
        %v352 = vpop.f32.mrf.mxu0
        %v353 = vadd.f32 0.0, %v352
        %354 = vmatprep.mubr.f32.mxu0 %v207
        %355 = vmatmul.mubr.f32.gmra.mxu0 %v206
        %v356 = vpop.f32.mrf.mxu0
        %v357 = vadd.f32 0.0, %v356
        %v358 = vpop.f32.mrf.mxu0
        %v359 = vadd.f32 0.0, %v358
        %360 = vmatprep.mubr.f32.mxu0 %v209
        %361 = vmatmul.mubr.f32.gmra.mxu0 %v208
        %v362 = vpop.f32.mrf.mxu0
        %v363 = vadd.f32 0.0, %v362
        %v364 = vpop.f32.mrf.mxu0
        %v365 = vadd.f32 0.0, %v364
        %366 = vmatprep.mubr.f32.mxu0 %v211
        %367 = vmatmul.mubr.f32.gmra.mxu0 %v210
        %v368 = vpop.f32.mrf.mxu0
        %v369 = vadd.f32 0.0, %v368
        %v370 = vpop.f32.mrf.mxu0
        %v371 = vadd.f32 0.0, %v370
        %372 = vmatprep.mubr.f32.mxu0 %v213
        %373 = vmatmul.mubr.f32.gmra.mxu0 %v212
        %v374 = vpop.f32.mrf.mxu0
        %v375 = vadd.f32 0.0, %v374
        %v376 = vpop.f32.mrf.mxu0
        %v377 = vadd.f32 0.0, %v376
        %378 = vmatprep.mubr.f32.mxu0 %v215
        %379 = vmatmul.mubr.f32.gmra.mxu0 %v214
        %v380 = vpop.f32.mrf.mxu0
        %v381 = vadd.f32 0.0, %v380
        %v382 = vpop.f32.mrf.mxu0
        %v383 = vadd.f32 0.0, %v382
        %384 = vmatprep.mubr.f32.mxu0 %v217
        %385 = vmatmul.mubr.f32.gmra.mxu0 %v216
        %v386 = vpop.f32.mrf.mxu0
        %v387 = vadd.f32 0.0, %v386
        %v388 = vpop.f32.mrf.mxu0
        %v389 = vadd.f32 0.0, %v388
        %390 = vmatprep.mubr.f32.mxu0 %v219
        %391 = vmatmul.mubr.f32.gmra.mxu0 %v218
        %v392 = vpop.f32.mrf.mxu0
        %v393 = vadd.f32 0.0, %v392
        %v394 = vpop.f32.mrf.mxu0
        %v395 = vadd.f32 0.0, %v394
        %396 = vdwg.mxu0
        %397 = vst [vmem:[%s199] sm:$0xff] %v351
        %398 = vst [vmem:[%s199 + $0x8] sm:$0xff] %v353
        %399 = vst [vmem:[%s199 + $0x10] sm:$0xff] %v357
        %400 = vst [vmem:[%s199 + $0x18] sm:$0xff] %v359
        %401 = vst [vmem:[%s199 + $0x20] sm:$0xff] %v363
        %402 = vst [vmem:[%s199 + $0x28] sm:$0xff] %v365
        %403 = vst [vmem:[%s199 + $0x30] sm:$0xff] %v369
        %404 = vst [vmem:[%s199 + $0x38] sm:$0xff] %v371
        %405 = vst [vmem:[%s199 + $0x40] sm:$0xff] %v375
        %406 = vst [vmem:[%s199 + $0x48] sm:$0xff] %v377
        %407 = vst [vmem:[%s199 + $0x50] sm:$0xff] %v381
        %408 = vst [vmem:[%s199 + $0x58] sm:$0xff] %v383
        %409 = vst [vmem:[%s199 + $0x60] sm:$0xff] %v387
        %410 = vst [vmem:[%s199 + $0x68] sm:$0xff] %v389
        %411 = vst [vmem:[%s199 + $0x70] sm:$0xff] %v393
        %412 = vst [vmem:[%s199 + $0x78] sm:$0xff] %v395
        %s413 = sand.u32 %s94, 1
        %s414 = scalar_lea.sflag [#allocation4], %s413
        %s415 = sand.u32 %s94, 1
        %s416 = smul.addr %s415, 128
        %s417 = scalar_lea.vmem [#allocation7], %s416
        // Predicated region
        $region37: #{tpu_custom_call.1} parent=27 // pred_check
          %p418 = pneg %p104
        $region38: #{tpu_custom_call.1} parent=27 // pred_check_branch
          %420 = sbr.rel (%p418) target = $region40
        $region39: #{tpu_custom_call.1} parent=27 // pred_region
          %s421 = smul.u32 8, %s24
          %s422 = smul.u32 2, %s25
          %s424 = ssub.s32 2048, 2048
          %425 = vsyncadd %s414, %s424
          %s426 = smul.addr %s421, 2
          %s427 = sadd.s32 %s422, %s426
          %s428 = smul.addr %s427, 128
          %s429 = scalar_lea.hbm %s2, %s428
          %s430 = sshll.u32 %s417, 4
          %s431 = int_to_ptr.vmem [resolvable:$true] %s430
          %436 = dma.vmem_to_hbm [thread:$0]  %s431, 2048, %s429, %s414, 256, 256, 16
        $region40: #{tpu_custom_call.1} parent=27 // pred_fallthru
          _
      $region28: #{tpu_custom_call.1} parent=5 // pred_fallthru
        _
      %p437 = scmp.le.s32.totalorder 2, %s15
      // Predicated region
      $region41: #{tpu_custom_call.1} parent=5 // pred_check
        %p438 = pneg %p437
      $region42: #{tpu_custom_call.1} parent=5 // pred_check_branch
        %440 = sbr.rel (%p438) target = $region44
      $region43: #{tpu_custom_call.1} parent=5 // pred_region
        %s441 = ssub.s32 %s15, 2
        // Predicated region
        $region45: #{tpu_custom_call.1} parent=43 // pred_check
          %p442 = pneg %p110
        $region46: #{tpu_custom_call.1} parent=43 // pred_check_branch
          %444 = sbr.rel (%p442) target = $region48
        $region47: #{tpu_custom_call.1} parent=43 // pred_region
          %s445 = sand.u32 %s95, 1
          %s446 = scalar_lea.sflag [#allocation4], %s445
          %s447 = sand.u32 %s95, 1
          %s448 = smul.addr %s447, 128
          %s449 = scalar_lea.vmem [#allocation7], %s448
          %450 = dma.done %s446, 2048
        $region48: #{tpu_custom_call.1} parent=43 // pred_fallthru
          _
      $region44: #{tpu_custom_call.1} parent=5 // pred_fallthru
        _
    $region6: #{tpu_custom_call.1} parent=1 // loop_footer
      %s19 = sadd.s32 1, %s15
    $region7: #{tpu_custom_call.1} parent=1 // loop_footer_branch
      %14 = sbr.rel target = $region3
    $region8: #{tpu_custom_call.1} parent=1 // loop_exit
      _
    %451 = vsyncpa [#allocation3], 1
    %s452 = scalar_lea.sflag [#allocation3], 1
    %453 = vsyncpa %s452, 1
    %454 = vsyncpa [#allocation6], 1
    %455 = vsyncpa [#allocation4], 1
    %s456 = scalar_lea.sflag [#allocation4], 1
    %457 = vsyncpa %s456, 1

</llo_original>
